<compile_context>
chip_gen: v6e
topology: v6e:2x2x1
jax: 0.10.0
libtpu: 0.0.40
codegen_flags: <defaults>
</compile_context>

<pallas_src>
import functools

import jax
import jax.numpy as jnp
from jax.experimental import pallas as pl
from jax.experimental.pallas import tpu as pltpu


def _qmix_kernel(q_ref, s_ref, wcat_ref, bcat_ref, wm2_ref, bm2_ref, out_ref,
                 *, nb_agents, mixer_hidden_dim):
    N, H = nb_agents, mixer_hidden_dim
    q = q_ref[...]          # (N, TM)  f32 -- batch rows on the lane axis
    s = s_ref[...]          # (TM, D)  f32 -- natural HBM layout, no wrapper transpose

    # Single fused hypernet matmul on the MXU: (Ctot, D) x (TM, D)^T -> (Ctot, TM).
    # Contraction on the last dim of both operands (same form as q @ k^T).
    h_all = jax.lax.dot_general(
        wcat_ref[...], s,
        dimension_numbers=(((1,), (1,)), ((), ())),
        preferred_element_type=jnp.float32) + bcat_ref[...]

    # Sublane-aligned slices of the fused result (offsets are multiples of 8).
    w1 = jnp.abs(h_all[0:N * H, :])                        # (N*H, TM)
    b1 = h_all[N * H:N * H + H, :]                         # (H,   TM)
    w2 = jnp.abs(h_all[N * H + H:N * H + 2 * H, :])        # (H,   TM)
    hmid = jnp.maximum(h_all[N * H + 2 * H:, :], 0.0)      # (Hh,  TM)

    # hidden = ELU(local_qs @ w1 + b1): the tiny (1,N)@(N,H) per-row matmul is
    # expanded as a short static sum over agents (sublane-aligned slices of w1,
    # sublane broadcast of q -- cheap VPU work).
    acc = b1
    for n in range(N):
        acc = acc + q[n:n + 1, :] * w1[n * H:(n + 1) * H, :]
    neg = jnp.minimum(acc, 0.0)                            # clamp exp argument
    hidden = jnp.where(acc > 0, acc, jnp.exp(neg) - 1.0)   # ELU(alpha=1), exp on EUP

    # hypernet_bias2 second layer on the MXU: (1, Hh) @ (Hh, TM) -> (1, TM).
    b2 = (jnp.dot(wm2_ref[...], hmid, preferred_element_type=jnp.float32)
          + bm2_ref[0])

    # Final mixing dot: 32-sublane XLU reduce -> lane-dense (1, TM) row.
    out_ref[...] = (jnp.sum(hidden * w2, axis=0, keepdims=True) + b2
                    ).astype(out_ref.dtype)


def qmixer_forward(local_qs, state, params, *, nb_agents, input_dim,
                   mixer_hidden_dim, tile_m=256):
    """local_qs: (T, B, nb_agents); state: (T, B, input_dim). Returns (T, B, 1)."""
    T, B, _ = local_qs.shape
    M = T * B
    assert tile_m % 128 == 0, "tile_m must be a multiple of 128 (lane width)"
    num_tiles = (M + tile_m - 1) // tile_m
    M_pad = num_tiles * tile_m
    pad = M_pad - M

    (W1, bW1, Wb1, bb1, W2, bW2, Wm1, bm1, Wm2, bm2) = params
    N, H, D = nb_agents, mixer_hidden_dim, input_dim
    Hh = Wm1.shape[1]
    Ctot = N * H + 2 * H + Hh

    # Fuse the four state-consuming hypernet layers into one matrix so the
    # kernel issues a single MXU matmul per tile (done once in the wrapper).
    wcat_t = jnp.concatenate([W1, Wb1, W2, Wm1], axis=1).T.astype(jnp.float32)    # (Ctot, D)
    bcat_t = jnp.concatenate([bW1, bb1, bW2, bm1], axis=1).T.astype(jnp.float32)  # (Ctot, 1)
    wm2_t = Wm2.T.astype(jnp.float32)                    # (1, Hh)
    bm2_s = bm2.reshape(1).astype(jnp.float32)           # (1,) scalar -> SMEM

    # Pad rows to a multiple of tile_m.  State keeps its natural (M, D) layout
    # (no extra HBM transpose pass); only the tiny q array is transposed so the
    # kernel sees agent values broadcast along lanes.
    q2 = local_qs.reshape(M, N).astype(jnp.float32)
    s2 = state.reshape(M, D).astype(jnp.float32)
    if pad:
        q2 = jnp.pad(q2, ((0, pad), (0, 0)))
        s2 = jnp.pad(s2, ((0, pad), (0, 0)))
    q_t = q2.T      # (N, M_pad)

    kernel = functools.partial(_qmix_kernel, nb_agents=N, mixer_hidden_dim=H)

    out = pl.pallas_call(
        kernel,
        out_shape=jax.ShapeDtypeStruct((1, M_pad), jnp.float32),
        grid_spec=pltpu.PrefetchScalarGridSpec(
            num_scalar_prefetch=0,
            grid=(num_tiles,),
            in_specs=[
                pl.BlockSpec((N, tile_m), lambda i: (0, i)),        # local_qs tile (lanes=rows)
                pl.BlockSpec((tile_m, D), lambda i: (i, 0)),        # state tile (natural layout)
                pl.BlockSpec((Ctot, D), lambda i: (0, 0)),          # fused hypernet W
                pl.BlockSpec((Ctot, 1), lambda i: (0, 0)),          # fused hypernet b
                pl.BlockSpec((1, Hh), lambda i: (0, 0)),            # bias2 fc2 weight (row)
                pl.BlockSpec(memory_space=pltpu.MemorySpace.SMEM),  # bias2 fc2 bias
            ],
            out_specs=pl.BlockSpec((1, tile_m), lambda i: (0, i)),  # lane-dense q_tot row
        ),
        compiler_params=pltpu.CompilerParams(
            dimension_semantics=("parallel",),      # megacore split on v7x
            vmem_limit_bytes=48 * 1024 * 1024,      # headroom for bigger tile_m
        ),
    )(q_t, s2, wcat_t, bcat_t, wm2_t, bm2_s)

    return out[0, :M].reshape(T, B, 1)


def init_params(key, *, input_dim, nb_agents, mixer_hidden_dim, hypernet_hidden_dim):
    """Deterministic init mirroring torch.nn.Linear default (U[-1/sqrt(fan_in), ..])."""
    def linear(k, fan_in, fan_out):
        kw, kb = jax.random.split(k)
        bound = 1.0 / jnp.sqrt(fan_in)
        W = jax.random.uniform(kw, (fan_in, fan_out), jnp.float32, -bound, bound)
        b = jax.random.uniform(kb, (1, fan_out), jnp.float32, -bound, bound)
        return W, b

    k1, k2, k3, k4, k5 = jax.random.split(key, 5)
    W1, bW1 = linear(k1, input_dim, nb_agents * mixer_hidden_dim)   # hypernet_weights1
    Wb1, bb1 = linear(k2, input_dim, mixer_hidden_dim)              # hypernet_bias1
    W2, bW2 = linear(k3, input_dim, mixer_hidden_dim)               # hypernet_weights2
    Wm1, bm1 = linear(k4, input_dim, hypernet_hidden_dim)           # hypernet_bias2 fc1
    Wm2, bm2 = linear(k5, hypernet_hidden_dim, 1)                   # hypernet_bias2 fc2
    return (W1, bW1, Wb1, bb1, W2, bW2, Wm1, bm1, Wm2, bm2)


def qmixer_reference(local_qs, state, params, *, nb_agents, input_dim,
                     mixer_hidden_dim):
    """Pure-JAX reference mirroring the PyTorch forward, for verification."""
    (W1, bW1, Wb1, bb1, W2, bW2, Wm1, bm1, Wm2, bm2) = params
    T, B, _ = local_qs.shape
    s = state.reshape(-1, B, input_dim).astype(jnp.float32)
    q = local_qs.reshape(-1, B, 1, nb_agents).astype(jnp.float32)
    w1 = jnp.abs(s @ W1 + bW1).reshape(-1, B, nb_agents, mixer_hidden_dim)
    b1 = (s @ Wb1 + bb1).reshape(-1, B, 1, mixer_hidden_dim)
    pre = jnp.matmul(q, w1) + b1
    hidden = jnp.where(pre > 0, pre, jnp.exp(jnp.minimum(pre, 0.0)) - 1.0)
    w2 = jnp.abs(s @ W2 + bW2).reshape(-1, B, mixer_hidden_dim, 1)
    b2 = (jnp.maximum(s @ Wm1 + bm1, 0.0) @ Wm2 + bm2).reshape(-1, B, 1, 1)
    out = jnp.matmul(hidden, w2) + b2
    return out.squeeze(-1)   # (T, B, 1)


if __name__ == "__main__":
    # Small, module-consistent shapes.
    nb_agents = 4
    obs_dim = 8
    input_dim = nb_agents * obs_dim          # 32
    mixer_hidden_dim = 32
    hypernet_hidden_dim = 64

    key = jax.random.PRNGKey(0)
    kq, ks, kp = jax.random.split(key, 3)
    params = init_params(kp, input_dim=input_dim, nb_agents=nb_agents,
                         mixer_hidden_dim=mixer_hidden_dim,
                         hypernet_hidden_dim=hypernet_hidden_dim)

    # Primary check: episode_length=8, batch=2 (M=16, padded to one 256 tile).
    T, B = 8, 2
    local_qs = jax.random.normal(kq, (T, B, nb_agents), jnp.float32)
    state = jax.random.normal(ks, (T, B, input_dim), jnp.float32)

    q_tot = qmixer_forward(local_qs, state, params,
                           nb_agents=nb_agents, input_dim=input_dim,
                           mixer_hidden_dim=mixer_hidden_dim, tile_m=256)
    q_tot = jax.block_until_ready(q_tot)
    q_ref = qmixer_reference(local_qs, state, params,
                             nb_agents=nb_agents, input_dim=input_dim,
                             mixer_hidden_dim=mixer_hidden_dim)
    assert q_tot.shape == (T, B, 1)
    assert jnp.allclose(q_tot, q_ref, atol=1e-4, rtol=1e-4)

    # Secondary check: non-multiple M exercising padding + multiple grid tiles.
    T2, B2 = 20, 10                          # M=200 -> padded to 256, 2 tiles of 128
    kq2, ks2 = jax.random.split(kq)
    local_qs2 = jax.random.normal(kq2, (T2, B2, nb_agents), jnp.float32)
    state2 = jax.random.normal(ks2, (T2, B2, input_dim), jnp.float32)
    q_tot2 = jax.block_until_ready(
        qmixer_forward(local_qs2, state2, params,
                       nb_agents=nb_agents, input_dim=input_dim,
                       mixer_hidden_dim=mixer_hidden_dim, tile_m=128))
    q_ref2 = qmixer_reference(local_qs2, state2, params,
                              nb_agents=nb_agents, input_dim=input_dim,
                              mixer_hidden_dim=mixer_hidden_dim)
    assert q_tot2.shape == (T2, B2, 1)
    assert jnp.allclose(q_tot2, q_ref2, atol=1e-4, rtol=1e-4)

    print("KERNEL_OK")
</pallas_src>

<mosaic_0001>
module attributes {stable_mosaic.version = 11 : i64} {
  func.func @_qmix_kernel(%arg0: i32, %arg1: memref<4x256xf32, #tpu.memory_space<vmem>>, %arg2: memref<256x32xf32, #tpu.memory_space<vmem>>, %arg3: memref<256x32xf32, #tpu.memory_space<vmem>>, %arg4: memref<256x1xf32, #tpu.memory_space<vmem>>, %arg5: memref<1x64xf32, #tpu.memory_space<vmem>>, %arg6: memref<1xf32, #tpu.memory_space<smem>>, %arg7: memref<1x256xf32, #tpu.memory_space<vmem>>) attributes {dimension_semantics = [#tpu.dimension_semantics<parallel>], iteration_bounds = array<i64: 1>, scalar_prefetch = 0 : i64, scratch_operands = 0 : i64, tpu.core_type = #tpu.core_type<tc>, window_params = [{transform_indices = @transform_0, window_bounds = array<i64: 4, 256>}, {transform_indices = @transform_1, window_bounds = array<i64: 256, 32>}, {pipeline_mode = #tpu.pipeline_mode<synchronous>, transform_indices = @transform_2, window_bounds = array<i64: 256, 32>}, {pipeline_mode = #tpu.pipeline_mode<synchronous>, transform_indices = @transform_3, window_bounds = array<i64: 256, 1>}, {pipeline_mode = #tpu.pipeline_mode<synchronous>, transform_indices = @transform_4, window_bounds = array<i64: 1, 64>}, {transform_indices = @transform_5, window_bounds = array<i64: 1>}, {transform_indices = @transform_6, window_bounds = array<i64: 1, 256>}]} {
    %c0 = arith.constant 0 : index
    %c0_0 = arith.constant 0 : index
    %0 = vector.load %arg1[%c0, %c0_0] : memref<4x256xf32, #tpu.memory_space<vmem>>, vector<4x256xf32>
    %c0_1 = arith.constant 0 : index
    %c0_2 = arith.constant 0 : index
    %1 = vector.load %arg2[%c0_1, %c0_2] : memref<256x32xf32, #tpu.memory_space<vmem>>, vector<256x32xf32>
    %c0_3 = arith.constant 0 : index
    %c0_4 = arith.constant 0 : index
    %2 = vector.load %arg3[%c0_3, %c0_4] : memref<256x32xf32, #tpu.memory_space<vmem>>, vector<256x32xf32>
    %cst = arith.constant dense<0.000000e+00> : vector<256x256xf32>
    %3 = tpu.matmul %2, %1, %cst {dimension_numbers = #tpu.dot_dimension_numbers<[1], [1], [0], [0], [0, 0, 1, 0], [], []>} : vector<256x32xf32>, vector<256x32xf32>, vector<256x256xf32> -> vector<256x256xf32>
    %c0_5 = arith.constant 0 : index
    %c0_6 = arith.constant 0 : index
    %4 = vector.load %arg4[%c0_5, %c0_6] : memref<256x1xf32, #tpu.memory_space<vmem>>, vector<256x1xf32>
    %5 = vector.broadcast %4 : vector<256x1xf32> to vector<256x256xf32>
    %6 = arith.addf %3, %5 : vector<256x256xf32>
    %7 = vector.extract_strided_slice %6 {offsets = [0, 0], sizes = [128, 256], strides = [1, 1]} : vector<256x256xf32> to vector<128x256xf32>
    %8 = math.absf %7 : vector<128x256xf32>
    %9 = vector.extract_strided_slice %6 {offsets = [128, 0], sizes = [32, 256], strides = [1, 1]} : vector<256x256xf32> to vector<32x256xf32>
    %10 = vector.extract_strided_slice %6 {offsets = [160, 0], sizes = [32, 256], strides = [1, 1]} : vector<256x256xf32> to vector<32x256xf32>
    %11 = math.absf %10 : vector<32x256xf32>
    %12 = vector.extract_strided_slice %6 {offsets = [192, 0], sizes = [64, 256], strides = [1, 1]} : vector<256x256xf32> to vector<64x256xf32>
    %cst_7 = arith.constant 0.000000e+00 : f32
    %13 = vector.broadcast %cst_7 : f32 to vector<64x256xf32>
    %14 = arith.maximumf %12, %13 : vector<64x256xf32>
    %15 = vector.extract_strided_slice %0 {offsets = [0, 0], sizes = [1, 256], strides = [1, 1]} : vector<4x256xf32> to vector<1x256xf32>
    %16 = vector.extract_strided_slice %8 {offsets = [0, 0], sizes = [32, 256], strides = [1, 1]} : vector<128x256xf32> to vector<32x256xf32>
    %17 = vector.broadcast %15 : vector<1x256xf32> to vector<32x256xf32>
    %18 = arith.mulf %17, %16 : vector<32x256xf32>
    %19 = arith.addf %9, %18 : vector<32x256xf32>
    %20 = vector.extract_strided_slice %0 {offsets = [1, 0], sizes = [1, 256], strides = [1, 1]} : vector<4x256xf32> to vector<1x256xf32>
    %21 = vector.extract_strided_slice %8 {offsets = [32, 0], sizes = [32, 256], strides = [1, 1]} : vector<128x256xf32> to vector<32x256xf32>
    %22 = vector.broadcast %20 : vector<1x256xf32> to vector<32x256xf32>
    %23 = arith.mulf %22, %21 : vector<32x256xf32>
    %24 = arith.addf %19, %23 : vector<32x256xf32>
    %25 = vector.extract_strided_slice %0 {offsets = [2, 0], sizes = [1, 256], strides = [1, 1]} : vector<4x256xf32> to vector<1x256xf32>
    %26 = vector.extract_strided_slice %8 {offsets = [64, 0], sizes = [32, 256], strides = [1, 1]} : vector<128x256xf32> to vector<32x256xf32>
    %27 = vector.broadcast %25 : vector<1x256xf32> to vector<32x256xf32>
    %28 = arith.mulf %27, %26 : vector<32x256xf32>
    %29 = arith.addf %24, %28 : vector<32x256xf32>
    %30 = vector.extract_strided_slice %0 {offsets = [3, 0], sizes = [1, 256], strides = [1, 1]} : vector<4x256xf32> to vector<1x256xf32>
    %31 = vector.extract_strided_slice %8 {offsets = [96, 0], sizes = [32, 256], strides = [1, 1]} : vector<128x256xf32> to vector<32x256xf32>
    %32 = vector.broadcast %30 : vector<1x256xf32> to vector<32x256xf32>
    %33 = arith.mulf %32, %31 : vector<32x256xf32>
    %34 = arith.addf %29, %33 : vector<32x256xf32>
    %cst_8 = arith.constant 0.000000e+00 : f32
    %35 = vector.broadcast %cst_8 : f32 to vector<32x256xf32>
    %36 = arith.minimumf %34, %35 : vector<32x256xf32>
    %cst_9 = arith.constant 0.000000e+00 : f32
    %37 = vector.broadcast %cst_9 : f32 to vector<32x256xf32>
    %38 = arith.cmpf ogt, %34, %37 : vector<32x256xf32>
    %39 = math.exp %36 : vector<32x256xf32>
    %cst_10 = arith.constant 1.000000e+00 : f32
    %40 = vector.broadcast %cst_10 : f32 to vector<32x256xf32>
    %41 = arith.subf %39, %40 : vector<32x256xf32>
    %42 = arith.select %38, %34, %41 : vector<32x256xi1>, vector<32x256xf32>
    %c0_11 = arith.constant 0 : index
    %c0_12 = arith.constant 0 : index
    %43 = vector.load %arg5[%c0_11, %c0_12] : memref<1x64xf32, #tpu.memory_space<vmem>>, vector<1x64xf32>
    %cst_13 = arith.constant dense<0.000000e+00> : vector<1x256xf32>
    %44 = tpu.matmul %43, %14, %cst_13 {dimension_numbers = #tpu.dot_dimension_numbers<[1], [0], [0], [1], [0, 0, 1, 1], [], []>} : vector<1x64xf32>, vector<64x256xf32>, vector<1x256xf32> -> vector<1x256xf32>
    %c0_14 = arith.constant 0 : index
    %45 = memref.load %arg6[%c0_14] : memref<1xf32, #tpu.memory_space<smem>>
    %46 = vector.broadcast %45 : f32 to vector<1x256xf32>
    %47 = arith.addf %44, %46 : vector<1x256xf32>
    %48 = arith.mulf %42, %11 : vector<32x256xf32>
    %cst_15 = arith.constant dense<0.000000e+00> : vector<256xf32>
    %49 = vector.multi_reduction <add>, %48, %cst_15 [0] : vector<32x256xf32> to vector<256xf32>
    %50 = vector.shape_cast %49 : vector<256xf32> to vector<1x256xf32>
    %51 = arith.addf %50, %47 : vector<1x256xf32>
    %c0_16 = arith.constant 0 : index
    %c0_17 = arith.constant 0 : index
    %52 = vector.load %arg7[%c0_16, %c0_17] : memref<1x256xf32, #tpu.memory_space<vmem>>, vector<1x256xf32>
    tpu.vector_store %arg7[%c0_16, %c0_17], %51 {strides = array<i32>} : memref<1x256xf32, #tpu.memory_space<vmem>>, vector<1x256xf32>,
    return
  }
  func.func @transform_0(%arg0: i32) -> (i32, i32) {
    %c0_i32 = arith.constant 0 : i32
    %c0_i32_0 = arith.constant 0 : i32
    return %c0_i32, %arg0 : i32, i32
  }
  func.func @transform_1(%arg0: i32) -> (i32, i32) {
    %c0_i32 = arith.constant 0 : i32
    %c0_i32_0 = arith.constant 0 : i32
    return %arg0, %c0_i32 : i32, i32
  }
  func.func @transform_2(%arg0: i32) -> (i32, i32) {
    %c0_i32 = arith.constant 0 : i32
    %c0_i32_0 = arith.constant 0 : i32
    %c0_i32_1 = arith.constant 0 : i32
    return %c0_i32, %c0_i32_0 : i32, i32
  }
  func.func @transform_3(%arg0: i32) -> (i32, i32) {
    %c0_i32 = arith.constant 0 : i32
    %c0_i32_0 = arith.constant 0 : i32
    %c0_i32_1 = arith.constant 0 : i32
    return %c0_i32, %c0_i32_0 : i32, i32
  }
  func.func @transform_4(%arg0: i32) -> (i32, i32) {
    %c0_i32 = arith.constant 0 : i32
    %c0_i32_0 = arith.constant 0 : i32
    %c0_i32_1 = arith.constant 0 : i32
    return %c0_i32, %c0_i32_0 : i32, i32
  }
  func.func @transform_5(%arg0: i32) -> i32 {
    %c0_i32 = arith.constant 0 : i32
    %c0_i32_0 = arith.constant 0 : i32
    return %c0_i32 : i32
  }
  func.func @transform_6(%arg0: i32) -> (i32, i32) {
    %c0_i32 = arith.constant 0 : i32
    %c0_i32_0 = arith.constant 0 : i32
    return %c0_i32, %arg0 : i32, i32
  }
}

</mosaic_0001>

<llo_original>
// kernel: tpu_custom_call.1
$region0: #{tpu_custom_call.1}
  #allocation0 [shape = 'u32[]', space=smem, size = 0x4, offset = 0x4, fixed_abs, tag = 'smem constant byte address 0x4 - core index']
  #allocation1 [shape = 'u32[144,128]{1,0:T(1,128)}', space=vmem, size = 0x12000, scoped, tag = 'internal scratch']
  #allocation2 [shape = 'f32[1]{0:T(128)S(6)}', space=smem, size = 0x200, scoped, tag = 'scoped memory for tpu_custom_call.1']
  %s0 = inlined_call_operand.vmem [shape: f32[4,256], index: 0, kind: input, shape index: {}]
  %s1 = inlined_call_operand.vmem [shape: f32[256,32], index: 1, kind: input, shape index: {}]
  %s2 = inlined_call_operand.vmem [shape: f32[256,32], index: 2, kind: input, shape index: {}]
  %s3 = inlined_call_operand.vmem [shape: f32[256,1], index: 3, kind: input, shape index: {}]
  %s4 = inlined_call_operand.vmem [shape: f32[1,64], index: 4, kind: input, shape index: {}]
  %s5 = inlined_call_operand.<no memory space> [shape: f32[1], index: 5, kind: input, shape index: {}]
  %s6 = inlined_call_operand.hbm [shape: f32[1,256], index: 6, kind: output, shape index: {}]
  %s7 = sld [smem:[#allocation0]]
  $region34: #{tpu_custom_call.1} parent=0
    _
  %s9 = ssub.s32 1, %s7
  %s10 = scalar_select 0, %s9, %s7
  %11 = sst [smem:[#allocation2]] %s5
  $region1: #{tpu_custom_call.1} parent=0
    #allocation3 [shape = 'u8[1024]{0}', space=vmem, size = 0x400, scoped, tag = 'output window, operand 0, single buffered']
    #allocation4 [shape = 's32[1]{0}', space=sflag, size = 0x4, scoped, tag = 'scoped memory for tpu_custom_call.1']
    %12 = vsyncpa [#allocation4], 0
    // Predicated region
    $region2: #{tpu_custom_call.1} parent=1 // pred_check
      _
    $region3: #{tpu_custom_call.1} parent=1 // pred_check_branch
      %14 = sbr.rel (0) target = $region5
    $region4: #{tpu_custom_call.1} parent=1 // pred_region
      _
    $region5: #{tpu_custom_call.1} parent=1 // pred_fallthru
      _
    // Predicated region
    $region6: #{tpu_custom_call.1} parent=1 // pred_check
      _
    $region7: #{tpu_custom_call.1} parent=1 // pred_check_branch
      %16 = sbr.rel (0) target = $region9
    $region8: #{tpu_custom_call.1} parent=1 // pred_region
      _
    $region9: #{tpu_custom_call.1} parent=1 // pred_fallthru
      _
    // Predicated region
    $region10: #{tpu_custom_call.1} parent=1 // pred_check
      _
    $region11: #{tpu_custom_call.1} parent=1 // pred_check_branch
      %18 = sbr.rel (0) target = $region13
    $region12: #{tpu_custom_call.1} parent=1 // pred_region
      _
    $region13: #{tpu_custom_call.1} parent=1 // pred_fallthru
      _
    // Predicated region
    $region14: #{tpu_custom_call.1} parent=1 // pred_check
      _
    $region15: #{tpu_custom_call.1} parent=1 // pred_check_branch
      %20 = sbr.rel (0) target = $region17
    $region16: #{tpu_custom_call.1} parent=1 // pred_region
      _
    $region17: #{tpu_custom_call.1} parent=1 // pred_fallthru
      _
    // Predicated region
    $region18: #{tpu_custom_call.1} parent=1 // pred_check
      _
    $region19: #{tpu_custom_call.1} parent=1 // pred_check_branch
      %22 = sbr.rel (0) target = $region21
    $region20: #{tpu_custom_call.1} parent=1 // pred_region
      _
    $region21: #{tpu_custom_call.1} parent=1 // pred_fallthru
      _
    // Predicated region
    $region22: #{tpu_custom_call.1} parent=1 // pred_check
      _
    $region23: #{tpu_custom_call.1} parent=1 // pred_check_branch
      %24 = sbr.rel (0) target = $region25
    $region24: #{tpu_custom_call.1} parent=1 // pred_region
      _
    $region25: #{tpu_custom_call.1} parent=1 // pred_fallthru
      _
    %v25 = vld [vmem:[%s0] sm:$0xff]
    %v26 = vld [vmem:[%s1] sm:$0xff]
    %v27 = vld [vmem:[%s1 + $0x8] sm:$0xff]
    %v28 = vld [vmem:[%s1 + $0x10] sm:$0xff]
    %v29 = vld [vmem:[%s1 + $0x18] sm:$0xff]
    %v30 = vld [vmem:[%s1 + $0x20] sm:$0xff]
    %v31 = vld [vmem:[%s1 + $0x28] sm:$0xff]
    %v32 = vld [vmem:[%s1 + $0x30] sm:$0xff]
    %v33 = vld [vmem:[%s1 + $0x38] sm:$0xff]
    %v34 = vld [vmem:[%s1 + $0x40] sm:$0xff]
    %v35 = vld [vmem:[%s1 + $0x48] sm:$0xff]
    %v36 = vld [vmem:[%s1 + $0x50] sm:$0xff]
    %v37 = vld [vmem:[%s1 + $0x58] sm:$0xff]
    %v38 = vld [vmem:[%s1 + $0x60] sm:$0xff]
    %v39 = vld [vmem:[%s1 + $0x68] sm:$0xff]
    %v40 = vld [vmem:[%s1 + $0x70] sm:$0xff]
    %v41 = vld [vmem:[%s1 + $0x78] sm:$0xff]
    %v42 = vld [vmem:[%s1 + $0x80] sm:$0xff]
    %v43 = vld [vmem:[%s1 + $0x88] sm:$0xff]
    %v44 = vld [vmem:[%s1 + $0x90] sm:$0xff]
    %v45 = vld [vmem:[%s1 + $0x98] sm:$0xff]
    %v46 = vld [vmem:[%s1 + $0xa0] sm:$0xff]
    %v47 = vld [vmem:[%s1 + $0xa8] sm:$0xff]
    %v48 = vld [vmem:[%s1 + $0xb0] sm:$0xff]
    %v49 = vld [vmem:[%s1 + $0xb8] sm:$0xff]
    %v50 = vld [vmem:[%s1 + $0xc0] sm:$0xff]
    %v51 = vld [vmem:[%s1 + $0xc8] sm:$0xff]
    %v52 = vld [vmem:[%s1 + $0xd0] sm:$0xff]
    %v53 = vld [vmem:[%s1 + $0xd8] sm:$0xff]
    %v54 = vld [vmem:[%s1 + $0xe0] sm:$0xff]
    %v55 = vld [vmem:[%s1 + $0xe8] sm:$0xff]
    %v56 = vld [vmem:[%s1 + $0xf0] sm:$0xff]
    %v57 = vld [vmem:[%s1 + $0xf8] sm:$0xff]
    %v58 = vld [vmem:[%s2] sm:$0xff]
    %v59 = vld [vmem:[%s2 + $0x8] sm:$0xff]
    %v60 = vld [vmem:[%s2 + $0x10] sm:$0xff]
    %v61 = vld [vmem:[%s2 + $0x18] sm:$0xff]
    %v62 = vld [vmem:[%s2 + $0x20] sm:$0xff]
    %v63 = vld [vmem:[%s2 + $0x28] sm:$0xff]
    %v64 = vld [vmem:[%s2 + $0x30] sm:$0xff]
    %v65 = vld [vmem:[%s2 + $0x38] sm:$0xff]
    %v66 = vld [vmem:[%s2 + $0x40] sm:$0xff]
    %v67 = vld [vmem:[%s2 + $0x48] sm:$0xff]
    %v68 = vld [vmem:[%s2 + $0x50] sm:$0xff]
    %v69 = vld [vmem:[%s2 + $0x58] sm:$0xff]
    %v70 = vld [vmem:[%s2 + $0x60] sm:$0xff]
    %v71 = vld [vmem:[%s2 + $0x68] sm:$0xff]
    %v72 = vld [vmem:[%s2 + $0x70] sm:$0xff]
    %v73 = vld [vmem:[%s2 + $0x78] sm:$0xff]
    %v74 = vld [vmem:[%s2 + $0x80] sm:$0xff]
    %v75 = vld [vmem:[%s2 + $0x88] sm:$0xff]
    %v76 = vld [vmem:[%s2 + $0x90] sm:$0xff]
    %v77 = vld [vmem:[%s2 + $0x98] sm:$0xff]
    %v78 = vld [vmem:[%s2 + $0xa0] sm:$0xff]
    %v79 = vld [vmem:[%s2 + $0xa8] sm:$0xff]
    %v80 = vld [vmem:[%s2 + $0xb0] sm:$0xff]
    %v81 = vld [vmem:[%s2 + $0xb8] sm:$0xff]
    %v82 = vld [vmem:[%s2 + $0xc0] sm:$0xff]
    %v83 = vld [vmem:[%s2 + $0xc8] sm:$0xff]
    %v84 = vld [vmem:[%s2 + $0xd0] sm:$0xff]
    %v85 = vld [vmem:[%s2 + $0xd8] sm:$0xff]
    %v86 = vld [vmem:[%s2 + $0xe0] sm:$0xff]
    %v87 = vld [vmem:[%s2 + $0xe8] sm:$0xff]
    %v88 = vld [vmem:[%s2 + $0xf0] sm:$0xff]
    %v89 = vld [vmem:[%s2 + $0xf8] sm:$0xff]
    %v90 = vld [vmem:[%s3] sm:$0xff]
    %v91 = vld [vmem:[%s3 + $0x8] sm:$0xff]
    %v92 = vld [vmem:[%s3 + $0x10] sm:$0xff]
    %v93 = vld [vmem:[%s3 + $0x18] sm:$0xff]
    %v94 = vld [vmem:[%s3 + $0x20] sm:$0xff]
    %v95 = vld [vmem:[%s3 + $0x28] sm:$0xff]
    %v96 = vld [vmem:[%s3 + $0x30] sm:$0xff]
    %v97 = vld [vmem:[%s3 + $0x38] sm:$0xff]
    %v98 = vld [vmem:[%s3 + $0x40] sm:$0xff]
    %v99 = vld [vmem:[%s3 + $0x48] sm:$0xff]
    %v100 = vld [vmem:[%s3 + $0x50] sm:$0xff]
    %v101 = vld [vmem:[%s3 + $0x58] sm:$0xff]
    %v102 = vld [vmem:[%s3 + $0x60] sm:$0xff]
    %v103 = vld [vmem:[%s3 + $0x68] sm:$0xff]
    %v104 = vld [vmem:[%s3 + $0x70] sm:$0xff]
    %v105 = vld [vmem:[%s3 + $0x78] sm:$0xff]
    %v106 = vld [vmem:[%s3 + $0x80] sm:$0xff]
    %v107 = vld [vmem:[%s3 + $0x88] sm:$0xff]
    %v108 = vld [vmem:[%s3 + $0x90] sm:$0xff]
    %v109 = vld [vmem:[%s3 + $0x98] sm:$0xff]
    %v110 = vld [vmem:[%s3 + $0xa0] sm:$0xff]
    %v111 = vld [vmem:[%s3 + $0xa8] sm:$0xff]
    %v112 = vld [vmem:[%s3 + $0xb0] sm:$0xff]
    %v113 = vld [vmem:[%s3 + $0xb8] sm:$0xff]
    %v114 = vld [vmem:[%s3 + $0xc0] sm:$0xff]
    %v115 = vld [vmem:[%s3 + $0xc8] sm:$0xff]
    %v116 = vld [vmem:[%s3 + $0xd0] sm:$0xff]
    %v117 = vld [vmem:[%s3 + $0xd8] sm:$0xff]
    %v118 = vld [vmem:[%s3 + $0xe0] sm:$0xff]
    %v119 = vld [vmem:[%s3 + $0xe8] sm:$0xff]
    %v120 = vld [vmem:[%s3 + $0xf0] sm:$0xff]
    %v121 = vld [vmem:[%s3 + $0xf8] sm:$0xff]
    %123 = vset.pattern.permute.xlu0 0
    %124 = vperm.xlu0 %123, %v90
    %v125 = vpop.permute.xlu0 %124
    %128 = vset.pattern.permute.xlu0 0
    %129 = vperm.xlu0 %128, %v91
    %v130 = vpop.permute.xlu0 %129
    %133 = vset.pattern.permute.xlu0 0
    %134 = vperm.xlu0 %133, %v92
    %v135 = vpop.permute.xlu0 %134
    %138 = vset.pattern.permute.xlu0 0
    %139 = vperm.xlu0 %138, %v93
    %v140 = vpop.permute.xlu0 %139
    %143 = vset.pattern.permute.xlu0 0
    %144 = vperm.xlu0 %143, %v94
    %v145 = vpop.permute.xlu0 %144
    %148 = vset.pattern.permute.xlu0 0
    %149 = vperm.xlu0 %148, %v95
    %v150 = vpop.permute.xlu0 %149
    %153 = vset.pattern.permute.xlu0 0
    %154 = vperm.xlu0 %153, %v96
    %v155 = vpop.permute.xlu0 %154
    %158 = vset.pattern.permute.xlu0 0
    %159 = vperm.xlu0 %158, %v97
    %v160 = vpop.permute.xlu0 %159
    %163 = vset.pattern.permute.xlu0 0
    %164 = vperm.xlu0 %163, %v98
    %v165 = vpop.permute.xlu0 %164
    %168 = vset.pattern.permute.xlu0 0
    %169 = vperm.xlu0 %168, %v99
    %v170 = vpop.permute.xlu0 %169
    %173 = vset.pattern.permute.xlu0 0
    %174 = vperm.xlu0 %173, %v100
    %v175 = vpop.permute.xlu0 %174
    %178 = vset.pattern.permute.xlu0 0
    %179 = vperm.xlu0 %178, %v101
    %v180 = vpop.permute.xlu0 %179
    %183 = vset.pattern.permute.xlu0 0
    %184 = vperm.xlu0 %183, %v102
    %v185 = vpop.permute.xlu0 %184
    %188 = vset.pattern.permute.xlu0 0
    %189 = vperm.xlu0 %188, %v103
    %v190 = vpop.permute.xlu0 %189
    %193 = vset.pattern.permute.xlu0 0
    %194 = vperm.xlu0 %193, %v104
    %v195 = vpop.permute.xlu0 %194
    %198 = vset.pattern.permute.xlu0 0
    %199 = vperm.xlu0 %198, %v105
    %v200 = vpop.permute.xlu0 %199
    %203 = vset.pattern.permute.xlu0 0
    %204 = vperm.xlu0 %203, %v106
    %v205 = vpop.permute.xlu0 %204
    %208 = vset.pattern.permute.xlu0 0
    %209 = vperm.xlu0 %208, %v107
    %v210 = vpop.permute.xlu0 %209
    %213 = vset.pattern.permute.xlu0 0
    %214 = vperm.xlu0 %213, %v108
    %v215 = vpop.permute.xlu0 %214
    %218 = vset.pattern.permute.xlu0 0
    %219 = vperm.xlu0 %218, %v109
    %v220 = vpop.permute.xlu0 %219
    %223 = vset.pattern.permute.xlu0 0
    %224 = vperm.xlu0 %223, %v110
    %v225 = vpop.permute.xlu0 %224
    %228 = vset.pattern.permute.xlu0 0
    %229 = vperm.xlu0 %228, %v111
    %v230 = vpop.permute.xlu0 %229
    %233 = vset.pattern.permute.xlu0 0
    %234 = vperm.xlu0 %233, %v112
    %v235 = vpop.permute.xlu0 %234
    %238 = vset.pattern.permute.xlu0 0
    %239 = vperm.xlu0 %238, %v113
    %v240 = vpop.permute.xlu0 %239
    %243 = vset.pattern.permute.xlu0 0
    %244 = vperm.xlu0 %243, %v114
    %v245 = vpop.permute.xlu0 %244
    %248 = vset.pattern.permute.xlu0 0
    %249 = vperm.xlu0 %248, %v115
    %v250 = vpop.permute.xlu0 %249
    %253 = vset.pattern.permute.xlu0 0
    %254 = vperm.xlu0 %253, %v116
    %v255 = vpop.permute.xlu0 %254
    %258 = vset.pattern.permute.xlu0 0
    %259 = vperm.xlu0 %258, %v117
    %v260 = vpop.permute.xlu0 %259
    %263 = vset.pattern.permute.xlu0 0
    %264 = vperm.xlu0 %263, %v118
    %v265 = vpop.permute.xlu0 %264
    %268 = vset.pattern.permute.xlu0 0
    %269 = vperm.xlu0 %268, %v119
    %v270 = vpop.permute.xlu0 %269
    %273 = vset.pattern.permute.xlu0 0
    %274 = vperm.xlu0 %273, %v120
    %v275 = vpop.permute.xlu0 %274
    %278 = vset.pattern.permute.xlu0 0
    %279 = vperm.xlu0 %278, %v121
    %v280 = vpop.permute.xlu0 %279
    %vm282 = vcmask 261120
    %v284 = vsel %vm282, %v58, 0
    %v287 = vsel %vm282, %v59, 0
    %v290 = vsel %vm282, %v60, 0
    %v293 = vsel %vm282, %v61, 0
    %v296 = vsel %vm282, %v62, 0
    %v299 = vsel %vm282, %v63, 0
    %v302 = vsel %vm282, %v64, 0
    %v305 = vsel %vm282, %v65, 0
    %v308 = vsel %vm282, %v66, 0
    %v311 = vsel %vm282, %v67, 0
    %v314 = vsel %vm282, %v68, 0
    %v317 = vsel %vm282, %v69, 0
    %v320 = vsel %vm282, %v70, 0
    %v323 = vsel %vm282, %v71, 0
    %v326 = vsel %vm282, %v72, 0
    %v329 = vsel %vm282, %v73, 0
    %v332 = vsel %vm282, %v74, 0
    %v335 = vsel %vm282, %v75, 0
    %v338 = vsel %vm282, %v76, 0
    %v341 = vsel %vm282, %v77, 0
    %v344 = vsel %vm282, %v78, 0
    %v347 = vsel %vm282, %v79, 0
    %v350 = vsel %vm282, %v80, 0
    %v353 = vsel %vm282, %v81, 0
    %v356 = vsel %vm282, %v82, 0
    %v359 = vsel %vm282, %v83, 0
    %v362 = vsel %vm282, %v84, 0
    %v365 = vsel %vm282, %v85, 0
    %v368 = vsel %vm282, %v86, 0
    %v371 = vsel %vm282, %v87, 0
    %v374 = vsel %vm282, %v88, 0
    %v377 = vsel %vm282, %v89, 0
    %v380 = vsel %vm282, %v26, 0
    %v383 = vsel %vm282, %v27, 0
    %v386 = vsel %vm282, %v28, 0
    %v389 = vsel %vm282, %v29, 0
    %v392 = vsel %vm282, %v30, 0
    %v395 = vsel %vm282, %v31, 0
    %v398 = vsel %vm282, %v32, 0
    %v401 = vsel %vm282, %v33, 0
    %v404 = vsel %vm282, %v34, 0
    %v407 = vsel %vm282, %v35, 0
    %v410 = vsel %vm282, %v36, 0
    %v413 = vsel %vm282, %v37, 0
    %v416 = vsel %vm282, %v38, 0
    %v419 = vsel %vm282, %v39, 0
    %v422 = vsel %vm282, %v40, 0
    %v425 = vsel %vm282, %v41, 0
    %v428 = vsel %vm282, %v42, 0
    %v431 = vsel %vm282, %v43, 0
    %v434 = vsel %vm282, %v44, 0
    %v437 = vsel %vm282, %v45, 0
    %v440 = vsel %vm282, %v46, 0
    %v443 = vsel %vm282, %v47, 0
    %v446 = vsel %vm282, %v48, 0
    %v449 = vsel %vm282, %v49, 0
    %v452 = vsel %vm282, %v50, 0
    %v455 = vsel %vm282, %v51, 0
    %v458 = vsel %vm282, %v52, 0
    %v461 = vsel %vm282, %v53, 0
    %v464 = vsel %vm282, %v54, 0
    %v467 = vsel %vm282, %v55, 0
    %v470 = vsel %vm282, %v56, 0
    %v473 = vsel %vm282, %v57, 0
    %475 = vmatprep.subr.mxu0 0.0
    %476 = vmatpush1.xpose.msra.mxu0 %v425
    %477 = vmatprep.subr.mxu0 0.0
    %478 = vmatpush1.xpose.msra.mxu0 %v422
    %479 = vmatprep.subr.mxu0 0.0
    %480 = vmatpush1.xpose.msra.mxu0 %v419
    %481 = vmatprep.subr.mxu0 0.0
    %482 = vmatpush1.xpose.msra.mxu0 %v416
    %483 = vmatprep.subr.mxu0 0.0
    %484 = vmatpush1.xpose.msra.mxu0 %v413
    %485 = vmatprep.subr.mxu0 0.0
    %486 = vmatpush1.xpose.msra.mxu0 %v410
    %487 = vmatprep.subr.mxu0 0.0
    %488 = vmatpush1.xpose.msra.mxu0 %v407
    %489 = vmatprep.subr.mxu0 0.0
    %490 = vmatpush1.xpose.msra.mxu0 %v404
    %491 = vmatprep.subr.mxu0 0.0
    %492 = vmatpush1.xpose.msra.mxu0 %v401
    %493 = vmatprep.subr.mxu0 0.0
    %494 = vmatpush1.xpose.msra.mxu0 %v398
    %495 = vmatprep.subr.mxu0 0.0
    %496 = vmatpush1.xpose.msra.mxu0 %v395
    %497 = vmatprep.subr.mxu0 0.0
    %498 = vmatpush1.xpose.msra.mxu0 %v392
    %499 = vmatprep.subr.mxu0 0.0
    %500 = vmatpush1.xpose.msra.mxu0 %v389
    %501 = vmatprep.subr.mxu0 0.0
    %502 = vmatpush1.xpose.msra.mxu0 %v386
    %503 = vmatprep.subr.mxu0 0.0
    %504 = vmatpush1.xpose.msra.mxu0 %v383
    %505 = vmatprep.subr.mxu0 0.0
    %506 = vmatpush1.xpose.msra.mxu0 %v380
    %507 = vmatprep.subr.mxu0 0.0
    %508 = vmatpush2.xpose.msra.mxu0 %v473
    %509 = vmatprep.subr.mxu0 0.0
    %510 = vmatpush2.xpose.msra.mxu0 %v470
    %511 = vmatprep.subr.mxu0 0.0
    %512 = vmatpush2.xpose.msra.mxu0 %v467
    %513 = vmatprep.subr.mxu0 0.0
    %514 = vmatpush2.xpose.msra.mxu0 %v464
    %515 = vmatprep.subr.mxu0 0.0
    %516 = vmatpush2.xpose.msra.mxu0 %v461
    %517 = vmatprep.subr.mxu0 0.0
    %518 = vmatpush2.xpose.msra.mxu0 %v458
    %519 = vmatprep.subr.mxu0 0.0
    %520 = vmatpush2.xpose.msra.mxu0 %v455
    %521 = vmatprep.subr.mxu0 0.0
    %522 = vmatpush2.xpose.msra.mxu0 %v452
    %523 = vmatprep.subr.mxu0 0.0
    %524 = vmatpush2.xpose.msra.mxu0 %v449
    %525 = vmatprep.subr.mxu0 0.0
    %526 = vmatpush2.xpose.msra.mxu0 %v446
    %527 = vmatprep.subr.mxu0 0.0
    %528 = vmatpush2.xpose.msra.mxu0 %v443
    %529 = vmatprep.subr.mxu0 0.0
    %530 = vmatpush2.xpose.msra.mxu0 %v440
    %531 = vmatprep.subr.mxu0 0.0
    %532 = vmatpush2.xpose.msra.mxu0 %v437
    %533 = vmatprep.subr.mxu0 0.0
    %534 = vmatpush2.xpose.msra.mxu0 %v434
    %535 = vmatprep.subr.mxu0 0.0
    %536 = vmatpush2.xpose.msra.mxu0 %v431
    %537 = vmatprep.subr.mxu0 0.0
    %538 = vmatpush2.xpose.msra.mxu0 %v428
    %539 = vmatprep.mubr.f32.mxu0 0.0
    %540 = vmatmul.mubr.f32.gmra.mxu0 %v284
    %v541 = vpop.f32.mrf.mxu0
    %v542 = vadd.f32 %v125, %v541
    %v543 = vpop.f32.mrf.mxu0
    %v544 = vadd.f32 %v125, %v543
    %545 = vmatprep.mubr.f32.mxu0 0.0
    %546 = vmatmul.mubr.f32.gmra.mxu0 %v287
    %v547 = vpop.f32.mrf.mxu0
    %v548 = vadd.f32 %v130, %v547
    %v549 = vpop.f32.mrf.mxu0
    %v550 = vadd.f32 %v130, %v549
    %551 = vmatprep.mubr.f32.mxu0 0.0
    %552 = vmatmul.mubr.f32.gmra.mxu0 %v290
    %v553 = vpop.f32.mrf.mxu0
    %v554 = vadd.f32 %v135, %v553
    %v555 = vpop.f32.mrf.mxu0
    %v556 = vadd.f32 %v135, %v555
    %557 = vmatprep.mubr.f32.mxu0 0.0
    %558 = vmatmul.mubr.f32.gmra.mxu0 %v293
    %v559 = vpop.f32.mrf.mxu0
    %v560 = vadd.f32 %v140, %v559
    %v561 = vpop.f32.mrf.mxu0
    %v562 = vadd.f32 %v140, %v561
    %563 = vmatprep.mubr.f32.mxu0 0.0
    %564 = vmatmul.mubr.f32.gmra.mxu0 %v296
    %v565 = vpop.f32.mrf.mxu0
    %v566 = vadd.f32 %v145, %v565
    %v567 = vpop.f32.mrf.mxu0
    %v568 = vadd.f32 %v145, %v567
    %569 = vmatprep.mubr.f32.mxu0 0.0
    %570 = vmatmul.mubr.f32.gmra.mxu0 %v299
    %v571 = vpop.f32.mrf.mxu0
    %v572 = vadd.f32 %v150, %v571
    %v573 = vpop.f32.mrf.mxu0
    %v574 = vadd.f32 %v150, %v573
    %575 = vmatprep.mubr.f32.mxu0 0.0
    %576 = vmatmul.mubr.f32.gmra.mxu0 %v302
    %v577 = vpop.f32.mrf.mxu0
    %v578 = vadd.f32 %v155, %v577
    %v579 = vpop.f32.mrf.mxu0
    %v580 = vadd.f32 %v155, %v579
    %581 = vmatprep.mubr.f32.mxu0 0.0
    %582 = vmatmul.mubr.f32.gmra.mxu0 %v305
    %v583 = vpop.f32.mrf.mxu0
    %v584 = vadd.f32 %v160, %v583
    %v585 = vpop.f32.mrf.mxu0
    %v586 = vadd.f32 %v160, %v585
    %587 = vmatprep.mubr.f32.mxu0 0.0
    %588 = vmatmul.mubr.f32.gmra.mxu0 %v308
    %v589 = vpop.f32.mrf.mxu0
    %v590 = vadd.f32 %v165, %v589
    %v591 = vpop.f32.mrf.mxu0
    %v592 = vadd.f32 %v165, %v591
    %593 = vmatprep.mubr.f32.mxu0 0.0
    %594 = vmatmul.mubr.f32.gmra.mxu0 %v311
    %v595 = vpop.f32.mrf.mxu0
    %v596 = vadd.f32 %v170, %v595
    %v597 = vpop.f32.mrf.mxu0
    %v598 = vadd.f32 %v170, %v597
    %599 = vmatprep.mubr.f32.mxu0 0.0
    %600 = vmatmul.mubr.f32.gmra.mxu0 %v314
    %v601 = vpop.f32.mrf.mxu0
    %v602 = vadd.f32 %v175, %v601
    %v603 = vpop.f32.mrf.mxu0
    %v604 = vadd.f32 %v175, %v603
    %605 = vmatprep.mubr.f32.mxu0 0.0
    %606 = vmatmul.mubr.f32.gmra.mxu0 %v317
    %v607 = vpop.f32.mrf.mxu0
    %v608 = vadd.f32 %v180, %v607
    %v609 = vpop.f32.mrf.mxu0
    %v610 = vadd.f32 %v180, %v609
    %611 = vmatprep.mubr.f32.mxu0 0.0
    %612 = vmatmul.mubr.f32.gmra.mxu0 %v320
    %v613 = vpop.f32.mrf.mxu0
    %v614 = vadd.f32 %v185, %v613
    %v615 = vpop.f32.mrf.mxu0
    %v616 = vadd.f32 %v185, %v615
    %617 = vmatprep.mubr.f32.mxu0 0.0
    %618 = vmatmul.mubr.f32.gmra.mxu0 %v323
    %v619 = vpop.f32.mrf.mxu0
    %v620 = vadd.f32 %v190, %v619
    %v621 = vpop.f32.mrf.mxu0
    %v622 = vadd.f32 %v190, %v621
    %623 = vmatprep.mubr.f32.mxu0 0.0
    %624 = vmatmul.mubr.f32.gmra.mxu0 %v326
    %v625 = vpop.f32.mrf.mxu0
    %v626 = vadd.f32 %v195, %v625
    %v627 = vpop.f32.mrf.mxu0
    %v628 = vadd.f32 %v195, %v627
    %629 = vmatprep.mubr.f32.mxu0 0.0
    %630 = vmatmul.mubr.f32.gmra.mxu0 %v329
    %v631 = vpop.f32.mrf.mxu0
    %v632 = vadd.f32 %v200, %v631
    %v633 = vpop.f32.mrf.mxu0
    %v634 = vadd.f32 %v200, %v633
    %635 = vmatprep.mubr.f32.mxu0 0.0
    %636 = vmatmul.mubr.f32.gmra.mxu0 %v332
    %v637 = vpop.f32.mrf.mxu0
    %v638 = vadd.f32 %v205, %v637
    %v639 = vpop.f32.mrf.mxu0
    %v640 = vadd.f32 %v205, %v639
    %641 = vmatprep.mubr.f32.mxu0 0.0
    %642 = vmatmul.mubr.f32.gmra.mxu0 %v335
    %v643 = vpop.f32.mrf.mxu0
    %v644 = vadd.f32 %v210, %v643
    %v645 = vpop.f32.mrf.mxu0
    %v646 = vadd.f32 %v210, %v645
    %647 = vmatprep.mubr.f32.mxu0 0.0
    %648 = vmatmul.mubr.f32.gmra.mxu0 %v338
    %v649 = vpop.f32.mrf.mxu0
    %v650 = vadd.f32 %v215, %v649
    %v651 = vpop.f32.mrf.mxu0
    %v652 = vadd.f32 %v215, %v651
    %653 = vmatprep.mubr.f32.mxu0 0.0
    %654 = vmatmul.mubr.f32.gmra.mxu0 %v341
    %v655 = vpop.f32.mrf.mxu0
    %v656 = vadd.f32 %v220, %v655
    %v657 = vpop.f32.mrf.mxu0
    %v658 = vadd.f32 %v220, %v657
    %659 = vmatprep.mubr.f32.mxu0 0.0
    %660 = vmatmul.mubr.f32.gmra.mxu0 %v344
    %v661 = vpop.f32.mrf.mxu0
    %v662 = vadd.f32 %v225, %v661
    %v663 = vpop.f32.mrf.mxu0
    %v664 = vadd.f32 %v225, %v663
    %665 = vmatprep.mubr.f32.mxu0 0.0
    %666 = vmatmul.mubr.f32.gmra.mxu0 %v347
    %v667 = vpop.f32.mrf.mxu0
    %v668 = vadd.f32 %v230, %v667
    %v669 = vpop.f32.mrf.mxu0
    %v670 = vadd.f32 %v230, %v669
    %671 = vmatprep.mubr.f32.mxu0 0.0
    %672 = vmatmul.mubr.f32.gmra.mxu0 %v350
    %v673 = vpop.f32.mrf.mxu0
    %v674 = vadd.f32 %v235, %v673
    %v675 = vpop.f32.mrf.mxu0
    %v676 = vadd.f32 %v235, %v675
    %677 = vmatprep.mubr.f32.mxu0 0.0
    %678 = vmatmul.mubr.f32.gmra.mxu0 %v353
    %v679 = vpop.f32.mrf.mxu0
    %v680 = vadd.f32 %v240, %v679
    %v681 = vpop.f32.mrf.mxu0
    %v682 = vadd.f32 %v240, %v681
    %683 = vmatprep.mubr.f32.mxu0 0.0
    %684 = vmatmul.mubr.f32.gmra.mxu0 %v356
    %v685 = vpop.f32.mrf.mxu0
    %v686 = vadd.f32 %v245, %v685
    %v687 = vpop.f32.mrf.mxu0
    %v688 = vadd.f32 %v245, %v687
    %689 = vmatprep.mubr.f32.mxu0 0.0
    %690 = vmatmul.mubr.f32.gmra.mxu0 %v359
    %v691 = vpop.f32.mrf.mxu0
    %v692 = vadd.f32 %v250, %v691
    %v693 = vpop.f32.mrf.mxu0
    %v694 = vadd.f32 %v250, %v693
    %695 = vmatprep.mubr.f32.mxu0 0.0
    %696 = vmatmul.mubr.f32.gmra.mxu0 %v362
    %v697 = vpop.f32.mrf.mxu0
    %v698 = vadd.f32 %v255, %v697
    %v699 = vpop.f32.mrf.mxu0
    %v700 = vadd.f32 %v255, %v699
    %701 = vmatprep.mubr.f32.mxu0 0.0
    %702 = vmatmul.mubr.f32.gmra.mxu0 %v365
    %v703 = vpop.f32.mrf.mxu0
    %v704 = vadd.f32 %v260, %v703
    %v705 = vpop.f32.mrf.mxu0
    %v706 = vadd.f32 %v260, %v705
    %707 = vmatprep.mubr.f32.mxu0 0.0
    %708 = vmatmul.mubr.f32.gmra.mxu0 %v368
    %v709 = vpop.f32.mrf.mxu0
    %v710 = vadd.f32 %v265, %v709
    %v711 = vpop.f32.mrf.mxu0
    %v712 = vadd.f32 %v265, %v711
    %713 = vmatprep.mubr.f32.mxu0 0.0
    %714 = vmatmul.mubr.f32.gmra.mxu0 %v371
    %v715 = vpop.f32.mrf.mxu0
    %v716 = vadd.f32 %v270, %v715
    %v717 = vpop.f32.mrf.mxu0
    %v718 = vadd.f32 %v270, %v717
    %719 = vmatprep.mubr.f32.mxu0 0.0
    %720 = vmatmul.mubr.f32.gmra.mxu0 %v374
    %v721 = vpop.f32.mrf.mxu0
    %v722 = vadd.f32 %v275, %v721
    %v723 = vpop.f32.mrf.mxu0
    %v724 = vadd.f32 %v275, %v723
    %725 = vmatprep.mubr.f32.mxu0 0.0
    %726 = vmatmul.mubr.f32.gmra.mxu0 %v377
    %v727 = vpop.f32.mrf.mxu0
    %v728 = vadd.f32 %v280, %v727
    %v729 = vpop.f32.mrf.mxu0
    %v730 = vadd.f32 %v280, %v729
    %731 = vdwg.mxu0
    %v732 = vand.u32 2147483647, %v542
    %v733 = vand.u32 2147483647, %v544
    %v734 = vand.u32 2147483647, %v548
    %v735 = vand.u32 2147483647, %v550
    %v736 = vand.u32 2147483647, %v554
    %v737 = vand.u32 2147483647, %v556
    %v738 = vand.u32 2147483647, %v560
    %v739 = vand.u32 2147483647, %v562
    %v740 = vand.u32 2147483647, %v566
    %v741 = vand.u32 2147483647, %v568
    %v742 = vand.u32 2147483647, %v572
    %v743 = vand.u32 2147483647, %v574
    %v744 = vand.u32 2147483647, %v578
    %v745 = vand.u32 2147483647, %v580
    %v746 = vand.u32 2147483647, %v584
    %v747 = vand.u32 2147483647, %v586
    %v748 = vand.u32 2147483647, %v590
    %v749 = vand.u32 2147483647, %v592
    %v750 = vand.u32 2147483647, %v596
    %v751 = vand.u32 2147483647, %v598
    %v752 = vand.u32 2147483647, %v602
    %v753 = vand.u32 2147483647, %v604
    %v754 = vand.u32 2147483647, %v608
    %v755 = vand.u32 2147483647, %v610
    %v756 = vand.u32 2147483647, %v614
    %v757 = vand.u32 2147483647, %v616
    %v758 = vand.u32 2147483647, %v620
    %v759 = vand.u32 2147483647, %v622
    %v760 = vand.u32 2147483647, %v626
    %v761 = vand.u32 2147483647, %v628
    %v762 = vand.u32 2147483647, %v632
    %v763 = vand.u32 2147483647, %v634
    %v764 = vand.u32 2147483647, %v662
    %v765 = vand.u32 2147483647, %v664
    %v766 = vand.u32 2147483647, %v668
    %v767 = vand.u32 2147483647, %v670
    %v768 = vand.u32 2147483647, %v674
    %v769 = vand.u32 2147483647, %v676
    %v770 = vand.u32 2147483647, %v680
    %v771 = vand.u32 2147483647, %v682
    %v772 = vmax.f32 %v686, 0.0
    %v773 = vmax.f32 %v688, 0.0
    %v774 = vmax.f32 %v692, 0.0
    %v775 = vmax.f32 %v694, 0.0
    %v776 = vmax.f32 %v698, 0.0
    %v777 = vmax.f32 %v700, 0.0
    %v778 = vmax.f32 %v704, 0.0
    %v779 = vmax.f32 %v706, 0.0
    %v780 = vmax.f32 %v710, 0.0
    %v781 = vmax.f32 %v712, 0.0
    %v782 = vmax.f32 %v716, 0.0
    %v783 = vmax.f32 %v718, 0.0
    %v784 = vmax.f32 %v722, 0.0
    %v785 = vmax.f32 %v724, 0.0
    %v786 = vmax.f32 %v728, 0.0
    %v787 = vmax.f32 %v730, 0.0
    %v789 = vlaneseq
    %v790 = vshrl.u32 %v789, 7
    %v791 = vsub.s32 0, %v790
    %v792 = vrot.slane %v25, %v791
    %v793 = vlaneseq
    %v794 = vshrl.u32 %v793, 7
    %v795 = vsub.s32 4, %v794
    %v796 = vrot.slane %v25, %v795
    %v799 = vlaneseq
    %v800 = vshrl.u32 %v799, 7
    %v801 = vsub.s32 0, %v800
    %v802 = vrot.slane %v792, %v801
    %v803 = vlaneseq
    %v804 = vshrl.u32 %v803, 7
    %v805 = vsub.s32 0, %v804
    %v806 = vrot.slane %v796, %v805
    %v807 = vmul.f32 %v802, %v732
    %v808 = vmul.f32 %v806, %v733
    %v809 = vmul.f32 %v802, %v734
    %v810 = vmul.f32 %v806, %v735
    %v811 = vmul.f32 %v802, %v736
    %v812 = vmul.f32 %v806, %v737
    %v813 = vmul.f32 %v802, %v738
    %v814 = vmul.f32 %v806, %v739
    %v815 = vadd.f32 %v638, %v807
    %v816 = vadd.f32 %v640, %v808
    %v817 = vadd.f32 %v644, %v809
    %v818 = vadd.f32 %v646, %v810
    %v819 = vadd.f32 %v650, %v811
    %v820 = vadd.f32 %v652, %v812
    %v821 = vadd.f32 %v656, %v813
    %v822 = vadd.f32 %v658, %v814
    %v823 = vlaneseq
    %v824 = vshrl.u32 %v823, 7
    %v825 = vsub.s32 1, %v824
    %v826 = vrot.slane %v25, %v825
    %v827 = vlaneseq
    %v828 = vshrl.u32 %v827, 7
    %v829 = vsub.s32 5, %v828
    %v830 = vrot.slane %v25, %v829
    %v833 = vlaneseq
    %v834 = vshrl.u32 %v833, 7
    %v835 = vsub.s32 1, %v834
    %v836 = vrot.slane %v826, %v835
    %v837 = vlaneseq
    %v838 = vshrl.u32 %v837, 7
    %v839 = vsub.s32 1, %v838
    %v840 = vrot.slane %v830, %v839
    %v841 = vmul.f32 %v836, %v740
    %v842 = vmul.f32 %v840, %v741
    %v843 = vmul.f32 %v836, %v742
    %v844 = vmul.f32 %v840, %v743
    %v845 = vmul.f32 %v836, %v744
    %v846 = vmul.f32 %v840, %v745
    %v847 = vmul.f32 %v836, %v746
    %v848 = vmul.f32 %v840, %v747
    %v849 = vadd.f32 %v815, %v841
    %v850 = vadd.f32 %v816, %v842
    %v851 = vadd.f32 %v817, %v843
    %v852 = vadd.f32 %v818, %v844
    %v853 = vadd.f32 %v819, %v845
    %v854 = vadd.f32 %v820, %v846
    %v855 = vadd.f32 %v821, %v847
    %v856 = vadd.f32 %v822, %v848
    %v857 = vlaneseq
    %v858 = vshrl.u32 %v857, 7
    %v859 = vsub.s32 2, %v858
    %v860 = vrot.slane %v25, %v859
    %v861 = vlaneseq
    %v862 = vshrl.u32 %v861, 7
    %v863 = vsub.s32 6, %v862
    %v864 = vrot.slane %v25, %v863
    %v867 = vlaneseq
    %v868 = vshrl.u32 %v867, 7
    %v869 = vsub.s32 2, %v868
    %v870 = vrot.slane %v860, %v869
    %v871 = vlaneseq
    %v872 = vshrl.u32 %v871, 7
    %v873 = vsub.s32 2, %v872
    %v874 = vrot.slane %v864, %v873
    %v875 = vmul.f32 %v870, %v748
    %v876 = vmul.f32 %v874, %v749
    %v877 = vmul.f32 %v870, %v750
    %v878 = vmul.f32 %v874, %v751
    %v879 = vmul.f32 %v870, %v752
    %v880 = vmul.f32 %v874, %v753
    %v881 = vmul.f32 %v870, %v754
    %v882 = vmul.f32 %v874, %v755
    %v883 = vadd.f32 %v849, %v875
    %v884 = vadd.f32 %v850, %v876
    %v885 = vadd.f32 %v851, %v877
    %v886 = vadd.f32 %v852, %v878
    %v887 = vadd.f32 %v853, %v879
    %v888 = vadd.f32 %v854, %v880
    %v889 = vadd.f32 %v855, %v881
    %v890 = vadd.f32 %v856, %v882
    %v891 = vlaneseq
    %v892 = vshrl.u32 %v891, 7
    %v893 = vsub.s32 3, %v892
    %v894 = vrot.slane %v25, %v893
    %v895 = vlaneseq
    %v896 = vshrl.u32 %v895, 7
    %v897 = vsub.s32 7, %v896
    %v898 = vrot.slane %v25, %v897
    %v901 = vlaneseq
    %v902 = vshrl.u32 %v901, 7
    %v903 = vsub.s32 3, %v902
    %v904 = vrot.slane %v894, %v903
    %v905 = vlaneseq
    %v906 = vshrl.u32 %v905, 7
    %v907 = vsub.s32 3, %v906
    %v908 = vrot.slane %v898, %v907
    %v909 = vmul.f32 %v904, %v756
    %v910 = vmul.f32 %v908, %v757
    %v911 = vmul.f32 %v904, %v758
    %v912 = vmul.f32 %v908, %v759
    %v913 = vmul.f32 %v904, %v760
    %v914 = vmul.f32 %v908, %v761
    %v915 = vmul.f32 %v904, %v762
    %v916 = vmul.f32 %v908, %v763
    %v917 = vadd.f32 %v883, %v909
    %v918 = vadd.f32 %v884, %v910
    %v919 = vadd.f32 %v885, %v911
    %v920 = vadd.f32 %v886, %v912
    %v921 = vadd.f32 %v887, %v913
    %v922 = vadd.f32 %v888, %v914
    %v923 = vadd.f32 %v889, %v915
    %v924 = vadd.f32 %v890, %v916
    %v925 = vmin.f32 %v917, 0.0
    %v926 = vmin.f32 %v918, 0.0
    %v927 = vmin.f32 %v919, 0.0
    %v928 = vmin.f32 %v920, 0.0
    %v929 = vmin.f32 %v921, 0.0
    %v930 = vmin.f32 %v922, 0.0
    %v931 = vmin.f32 %v923, 0.0
    %v932 = vmin.f32 %v924, 0.0
    %vm933 = vcmp.gt.f32.partialorder %v917, 0.0
    %vm934 = vcmp.gt.f32.partialorder %v918, 0.0
    %vm935 = vcmp.gt.f32.partialorder %v919, 0.0
    %vm936 = vcmp.gt.f32.partialorder %v920, 0.0
    %vm937 = vcmp.gt.f32.partialorder %v921, 0.0
    %vm938 = vcmp.gt.f32.partialorder %v922, 0.0
    %vm939 = vcmp.gt.f32.partialorder %v923, 0.0
    %vm940 = vcmp.gt.f32.partialorder %v924, 0.0
    %v941 = vmul.f32 %v925, 1.442695
    %v942 = vpow.pop %v941
    %v943 = vmul.f32 %v926, 1.442695
    %v944 = vpow.pop %v943
    %v945 = vmul.f32 %v927, 1.442695
    %v946 = vpow.pop %v945
    %v947 = vmul.f32 %v928, 1.442695
    %v948 = vpow.pop %v947
    %v949 = vmul.f32 %v929, 1.442695
    %v950 = vpow.pop %v949
    %v951 = vmul.f32 %v930, 1.442695
    %v952 = vpow.pop %v951
    %v953 = vmul.f32 %v931, 1.442695
    %v954 = vpow.pop %v953
    %v955 = vmul.f32 %v932, 1.442695
    %v956 = vpow.pop %v955
    %v957 = vsub.f32 %v942, 1.0
    %v958 = vsub.f32 %v944, 1.0
    %v959 = vsub.f32 %v946, 1.0
    %v960 = vsub.f32 %v948, 1.0
    %v961 = vsub.f32 %v950, 1.0
    %v962 = vsub.f32 %v952, 1.0
    %v963 = vsub.f32 %v954, 1.0
    %v964 = vsub.f32 %v956, 1.0
    %v965 = vsel %vm933, %v917, %v957
    %v966 = vsel %vm934, %v918, %v958
    %v967 = vsel %vm935, %v919, %v959
    %v968 = vsel %vm936, %v920, %v960
    %v969 = vsel %vm937, %v921, %v961
    %v970 = vsel %vm938, %v922, %v962
    %v971 = vsel %vm939, %v923, %v963
    %v972 = vsel %vm940, %v924, %v964
    %v973 = vld [vmem:[%s4] sm:$0x1]
    %s974 = sld [smem:[#allocation2]]
    %v975 = vstv %s974
    %vm976 = vcmask 523264
    %v978 = vsel %vm976, %v973, 0
    %980 = vmatprep.subr.mxu0 0.0
    %981 = vmatpush1.msra.mxu0 0.0
    %982 = vmatprep.subr.mxu0 0.0
    %983 = vmatpush1.msra.mxu0 0.0
    %984 = vmatprep.subr.mxu0 0.0
    %985 = vmatpush1.msra.mxu0 0.0
    %986 = vmatprep.subr.mxu0 0.0
    %987 = vmatpush1.msra.mxu0 0.0
    %988 = vmatprep.subr.mxu0 0.0
    %989 = vmatpush1.msra.mxu0 0.0
    %990 = vmatprep.subr.mxu0 0.0
    %991 = vmatpush1.msra.mxu0 0.0
    %992 = vmatprep.subr.mxu0 0.0
    %993 = vmatpush1.msra.mxu0 0.0
    %994 = vmatprep.subr.mxu0 0.0
    %995 = vmatpush1.msra.mxu0 0.0
    %996 = vmatprep.subr.mxu0 %v787
    %997 = vmatpush1.msra.mxu0 %v786
    %998 = vmatprep.subr.mxu0 %v785
    %999 = vmatpush1.msra.mxu0 %v784
    %1000 = vmatprep.subr.mxu0 %v783
    %1001 = vmatpush1.msra.mxu0 %v782
    %1002 = vmatprep.subr.mxu0 %v781
    %1003 = vmatpush1.msra.mxu0 %v780
    %1004 = vmatprep.subr.mxu0 %v779
    %1005 = vmatpush1.msra.mxu0 %v778
    %1006 = vmatprep.subr.mxu0 %v777
    %1007 = vmatpush1.msra.mxu0 %v776
    %1008 = vmatprep.subr.mxu0 %v775
    %1009 = vmatpush1.msra.mxu0 %v774
    %1010 = vmatprep.subr.mxu0 %v773
    %1011 = vmatpush1.msra.mxu0 %v772
    %1012 = vmatprep.subr.mxu0 0.0
    %1013 = vmatpush2.msra.mxu0 0.0
    %1014 = vmatprep.subr.mxu0 0.0
    %1015 = vmatpush2.msra.mxu0 0.0
    %1016 = vmatprep.subr.mxu0 0.0
    %1017 = vmatpush2.msra.mxu0 0.0
    %1018 = vmatprep.subr.mxu0 0.0
    %1019 = vmatpush2.msra.mxu0 0.0
    %1020 = vmatprep.subr.mxu0 0.0
    %1021 = vmatpush2.msra.mxu0 0.0
    %1022 = vmatprep.subr.mxu0 0.0
    %1023 = vmatpush2.msra.mxu0 0.0
    %1024 = vmatprep.subr.mxu0 0.0
    %1025 = vmatpush2.msra.mxu0 0.0
    %1026 = vmatprep.subr.mxu0 0.0
    %1027 = vmatpush2.msra.mxu0 0.0
    %1028 = vmatprep.subr.mxu0 0.0
    %1029 = vmatpush2.msra.mxu0 0.0
    %1030 = vmatprep.subr.mxu0 0.0
    %1031 = vmatpush2.msra.mxu0 0.0
    %1032 = vmatprep.subr.mxu0 0.0
    %1033 = vmatpush2.msra.mxu0 0.0
    %1034 = vmatprep.subr.mxu0 0.0
    %1035 = vmatpush2.msra.mxu0 0.0
    %1036 = vmatprep.subr.mxu0 0.0
    %1037 = vmatpush2.msra.mxu0 0.0
    %1038 = vmatprep.subr.mxu0 0.0
    %1039 = vmatpush2.msra.mxu0 0.0
    %1040 = vmatprep.subr.mxu0 0.0
    %1041 = vmatpush2.msra.mxu0 0.0
    %1042 = vmatprep.subr.mxu0 0.0
    %1043 = vmatpush2.msra.mxu0 0.0
    %1044 = vmatprep.mubr.f32.mxu0 0.0
    %1045 = vmatmul.mubr.f32.gmra.mxu0 %v978
    %v1046 = vpop.f32.mrf.mxu0
    %v1047 = vadd.f32 %v975, %v1046
    %v1048 = vpop.f32.mrf.mxu0
    %v1049 = vadd.f32 %v975, %v1048
    %1050 = vdwg.mxu0
    %v1051 = vmul.f32 %v965, %v764
    %v1052 = vmul.f32 %v966, %v765
    %v1053 = vmul.f32 %v967, %v766
    %v1054 = vmul.f32 %v968, %v767
    %v1055 = vmul.f32 %v969, %v768
    %v1056 = vmul.f32 %v970, %v769
    %v1057 = vmul.f32 %v971, %v770
    %v1058 = vmul.f32 %v972, %v771
    %v1059 = vadd.f32 %v1051, %v1053
    %v1060 = vadd.f32 %v1059, %v1055
    %v1061 = vadd.f32 %v1060, %v1057
    %v1062 = vrot.slane %v1061, 4
    %v1063 = vadd.f32 %v1061, %v1062
    %v1064 = vrot.slane %v1063, 2
    %v1065 = vadd.f32 %v1063, %v1064
    %v1066 = vrot.slane %v1065, 1
    %v1067 = vadd.f32 %v1065, %v1066
    %v1068 = vadd.f32 %v1052, %v1054
    %v1069 = vadd.f32 %v1068, %v1056
    %v1070 = vadd.f32 %v1069, %v1058
    %v1071 = vrot.slane %v1070, 4
    %v1072 = vadd.f32 %v1070, %v1071
    %v1073 = vrot.slane %v1072, 2
    %v1074 = vadd.f32 %v1072, %v1073
    %v1075 = vrot.slane %v1074, 1
    %v1076 = vadd.f32 %v1074, %v1075
    %v1077 = vadd.f32 %v1067, %v1047
    %v1078 = vadd.f32 %v1076, %v1049
    %v1081 = vcombine.low %v1077, %v1078
    %v1083 = vunpack.c.l.s4 1966171168
    %v1084 = vunpack.c.0.s8 %v1083
    %v1085 = vlaneseq
    %v1086 = vshrl.u32 %v1085, 7
    %v1087 = vsub.s32 %v1084, %v1086
    %v1088 = vrot.slane %v1081, %v1087
    %v1090 = vunpack.c.l.s4 1966171168
    %v1091 = vunpack.c.0.s8 %v1090
    %v1092 = vlaneseq
    %v1093 = vshrl.u32 %v1092, 7
    %v1094 = vsub.s32 %v1091, %v1093
    %v1095 = vrot.slane %v1088, %v1094
    %v1097 = vlaneseq
    %vm1098 = vcmp.ge.s32.totalorder %v1097, 0
    %vm1099 = vcmp.lt.s32.totalorder %v1097, 256
    %vm1100 = vmand %vm1098, %vm1099
    %1101 = vst.msk [vmem:[#allocation3] sm:$0x3] %vm1100, %v1095
    // Predicated region
    $region26: #{tpu_custom_call.1} parent=1 // pred_check
      _
    $region27: #{tpu_custom_call.1} parent=1 // pred_check_branch
      %1103 = sbr.rel (0) target = $region29
    $region28: #{tpu_custom_call.1} parent=1 // pred_region
      %s1105 = ssub.s32 32, 32
      %1106 = vsyncadd [#allocation4], %s1105
      %s1108 = sshll.u32 [#allocation3], 4
      %s1109 = int_to_ptr.vmem [resolvable:$true] %s1108
      %1111 = dma.vmem_to_hbm [thread:$0]  %s1109, 32, %s6, [#allocation4]
    $region29: #{tpu_custom_call.1} parent=1 // pred_fallthru
      _
    // Predicated region
    $region30: #{tpu_custom_call.1} parent=1 // pred_check
      _
    $region31: #{tpu_custom_call.1} parent=1 // pred_check_branch
      %1113 = sbr.rel (0) target = $region33
    $region32: #{tpu_custom_call.1} parent=1 // pred_region
      %1114 = dma.done [#allocation4], 32
    $region33: #{tpu_custom_call.1} parent=1 // pred_fallthru
      _
    %1115 = vsyncpa [#allocation4], 1

</llo_original>
